<compile_context>
chip_gen: v6e
topology: v6e:2x2x1
jax: 0.10.0
libtpu: 0.0.40
codegen_flags: <defaults>
</compile_context>

<pallas_src>
import functools

import jax
import jax.numpy as jnp
from jax.experimental import pallas as pl
from jax.experimental.pallas import tpu as pltpu


LANE = 128            # internal hidden dims padded to multiples of this
MAX_BATCH_TILE = 2048  # rows per grid step


def _round_up(x, m):
    return (x + m - 1) // m * m


def _pad2(a, rows, cols, dtype):
    """Zero-pad a 2-D array to (rows, cols) and cast."""
    out = jnp.zeros((rows, cols), dtype)
    return out.at[: a.shape[0], : a.shape[1]].set(a.astype(dtype))


# ---------------------------------------------------------------------------
# Kernel: 4 chained matmuls on the MXU (bf16 inputs, f32 accumulate),
# bias + ReLU in f32, single narrow (action_dim+1)-wide output store.
# ---------------------------------------------------------------------------
def actor_critic_kernel(
    x_ref,                    # (tb, state_dim) f32
    w1_ref, b1_ref,           # state_dim -> 128
    w2_ref, b2_ref,           # 128 -> hidden_p
    w3_ref, b3_ref,           # hidden_p -> 128 (32 padded)
    wh_ref, bh_ref,           # 128 -> action_dim+1 (actor|critic fused)
    out_ref,                  # (tb, action_dim+1) f32
):
    h = jnp.dot(x_ref[...].astype(jnp.bfloat16), w1_ref[...],
                preferred_element_type=jnp.float32) + b1_ref[...]
    h = jnp.maximum(h, 0.0)

    h = jnp.dot(h.astype(jnp.bfloat16), w2_ref[...],
                preferred_element_type=jnp.float32) + b2_ref[...]
    h = jnp.maximum(h, 0.0)

    h = jnp.dot(h.astype(jnp.bfloat16), w3_ref[...],
                preferred_element_type=jnp.float32) + b3_ref[...]
    h = jnp.maximum(h, 0.0)

    out_ref[...] = (
        jnp.dot(h.astype(jnp.bfloat16), wh_ref[...],
                preferred_element_type=jnp.float32) + bh_ref[...]
    )


# ---------------------------------------------------------------------------
# Host-side param prep: fuse actor/critic heads, pad hidden dims to 128,
# weights -> bf16 (zero padding is exact in bf16), biases stay f32.
# ---------------------------------------------------------------------------
def prepare_params(params):
    state_dim = params["w1"].shape[0]
    d1 = params["w1"].shape[1]             # 128
    hidden = params["w2"].shape[1]
    d3 = params["w3"].shape[1]             # 32
    action_dim = params["wa"].shape[1]
    head = action_dim + 1                  # logits | value, stored unpadded

    p1 = _round_up(d1, LANE)
    p2 = _round_up(hidden, LANE)
    p3 = _round_up(d3, LANE)

    w_head = jnp.concatenate([params["wa"], params["wc"]], axis=1)
    b_head = jnp.concatenate([params["ba"], params["bc"]], axis=1)

    padded = {
        "w1": _pad2(params["w1"], state_dim, p1, jnp.bfloat16),
        "b1": _pad2(params["b1"], 1, p1, jnp.float32),
        "w2": _pad2(params["w2"], p1, p2, jnp.bfloat16),
        "b2": _pad2(params["b2"], 1, p2, jnp.float32),
        "w3": _pad2(params["w3"], p2, p3, jnp.bfloat16),
        "b3": _pad2(params["b3"], 1, p3, jnp.float32),
        "wh": _pad2(w_head, p3, head, jnp.bfloat16),
        "bh": _pad2(b_head, 1, head, jnp.float32),
    }
    return padded


# ---------------------------------------------------------------------------
# Forward wrapper: batch-grid pallas_call with ragged last tile.
# ---------------------------------------------------------------------------
@jax.jit
def actor_critic_forward(x, padded):
    """x: (B, state_dim) f32 -> (logits (B, action_dim), value (B, 1))."""
    B, state_dim = x.shape
    head = padded["wh"].shape[1]
    action_dim = head - 1

    # Batch tile: large enough to amortize per-step overhead, but keep >= 2
    # grid steps whenever possible so v7x's two TensorCores both get work.
    half = _round_up(pl.cdiv(max(B, 8), 2), 8)
    tb = min(MAX_BATCH_TILE, max(8, half))
    grid = (pl.cdiv(B, tb),)   # ragged last tile; OOB rows masked on writeback

    p1 = padded["w1"].shape[1]
    p2 = padded["w2"].shape[1]
    p3 = padded["w3"].shape[1]

    flops = 2 * B * (state_dim * p1 + p1 * p2 + p2 * p3 + p3 * head)
    weight_bytes = sum(int(v.size) * v.dtype.itemsize for v in padded.values())
    bytes_accessed = 4 * B * (state_dim + head) + weight_bytes

    def _wspec(arr):
        # Weights / biases: same (0, 0) block every grid step -> VMEM-resident.
        return pl.BlockSpec(arr.shape, lambda i: (0, 0))

    out = pl.pallas_call(
        actor_critic_kernel,
        out_shape=jax.ShapeDtypeStruct((B, head), jnp.float32),
        grid=grid,
        in_specs=[
            pl.BlockSpec((tb, state_dim), lambda i: (i, 0)),   # x tile (pipelined)
            _wspec(padded["w1"]), _wspec(padded["b1"]),
            _wspec(padded["w2"]), _wspec(padded["b2"]),
            _wspec(padded["w3"]), _wspec(padded["b3"]),
            _wspec(padded["wh"]), _wspec(padded["bh"]),
        ],
        out_specs=pl.BlockSpec((tb, head), lambda i: (i, 0)),
        compiler_params=pltpu.CompilerParams(
            dimension_semantics=("parallel",),                 # 2-TC sharding on v7x
        ),
        cost_estimate=pl.CostEstimate(
            flops=flops, transcendentals=0, bytes_accessed=bytes_accessed
        ),
    )(
        x,
        padded["w1"], padded["b1"],
        padded["w2"], padded["b2"],
        padded["w3"], padded["b3"],
        padded["wh"], padded["bh"],
    )

    return out[:, :action_dim], out[:, action_dim:]


# ---------------------------------------------------------------------------
# Synthetic init (matches nn.Linear shapes, weights stored transposed) + refs.
# ---------------------------------------------------------------------------
def init_params(key, state_dim, action_dim, hidden_size):
    dims = [
        ("w1", "b1", state_dim, 128),
        ("w2", "b2", 128, hidden_size),
        ("w3", "b3", hidden_size, 32),
        ("wa", "ba", 32, action_dim),
        ("wc", "bc", 32, 1),
    ]
    params = {}
    keys = jax.random.split(key, len(dims) * 2)
    for i, (wn, bn, fan_in, fan_out) in enumerate(dims):
        bound = 1.0 / jnp.sqrt(jnp.float32(fan_in))
        params[wn] = jax.random.uniform(
            keys[2 * i], (fan_in, fan_out), jnp.float32, -bound, bound
        )
        params[bn] = jax.random.uniform(
            keys[2 * i + 1], (1, fan_out), jnp.float32, -bound, bound
        )
    return params


def reference_forward(x, params):
    h = jnp.maximum(x @ params["w1"] + params["b1"], 0.0)
    h = jnp.maximum(h @ params["w2"] + params["b2"], 0.0)
    h = jnp.maximum(h @ params["w3"] + params["b3"], 0.0)
    return h @ params["wa"] + params["ba"], h @ params["wc"] + params["bc"]


def reference_forward_bf16(x, params):
    def mm(a, w):
        return jnp.dot(a.astype(jnp.bfloat16), w.astype(jnp.bfloat16),
                       preferred_element_type=jnp.float32)
    h = jnp.maximum(mm(x, params["w1"]) + params["b1"], 0.0)
    h = jnp.maximum(mm(h, params["w2"]) + params["b2"], 0.0)
    h = jnp.maximum(mm(h, params["w3"]) + params["b3"], 0.0)
    return mm(h, params["wa"]) + params["ba"], mm(h, params["wc"]) + params["bc"]


if __name__ == "__main__":
    state_dim, action_dim, hidden_size = 16, 8, 32
    batch = 8

    key = jax.random.PRNGKey(0)
    k_params, k_x = jax.random.split(key)
    params = init_params(k_params, state_dim, action_dim, hidden_size)
    x = jax.random.normal(k_x, (batch, state_dim), dtype=jnp.float32)

    padded = prepare_params(params)

    logits, value = actor_critic_forward(x, padded)
    logits, value = jax.block_until_ready((logits, value))

    assert logits.shape == (batch, action_dim)
    assert value.shape == (batch, 1)

    # Tight check against a bf16-matmul / f32-accumulate emulation of the net,
    # loose check against the pure f32 reference (bf16 MXU inputs by design).
    ref_bl, ref_bv = reference_forward_bf16(x, params)
    ref_fl, ref_fv = reference_forward(x, params)
    assert jnp.allclose(logits, ref_bl, atol=5e-3, rtol=5e-3)
    assert jnp.allclose(value, ref_bv, atol=5e-3, rtol=5e-3)
    assert jnp.allclose(logits, ref_fl, atol=5e-2, rtol=5e-2)
    assert jnp.allclose(value, ref_fv, atol=5e-2, rtol=5e-2)

    # Multi-step grid with a ragged last tile (exercises masked boundary
    # writeback and the >=2-grid-step path for v7x megacore).
    big_b = 1537
    big_x = jax.random.normal(jax.random.PRNGKey(1), (big_b, state_dim), jnp.float32)
    big_logits, big_value = actor_critic_forward(big_x, padded)
    big_logits, big_value = jax.block_until_ready((big_logits, big_value))
    rbl, rbv = reference_forward_bf16(big_x, params)
    assert big_logits.shape == (big_b, action_dim)
    assert big_value.shape == (big_b, 1)
    assert jnp.allclose(big_logits, rbl, atol=5e-3, rtol=5e-3)
    assert jnp.allclose(big_value, rbv, atol=5e-3, rtol=5e-3)

    # TODO(synk): `act()` (Categorical sampling, action masking, .item()) is
    # host-side control logic outside the forward hot path; not a kernel.
    print("KERNEL_OK")
</pallas_src>

<mosaic_0001>
module attributes {stable_mosaic.version = 11 : i64} {
  func.func @actor_critic_kernel(%arg0: i32, %arg1: memref<8x16xf32, #tpu.memory_space<vmem>>, %arg2: memref<16x128xbf16, #tpu.memory_space<vmem>>, %arg3: memref<1x128xf32, #tpu.memory_space<vmem>>, %arg4: memref<128x128xbf16, #tpu.memory_space<vmem>>, %arg5: memref<1x128xf32, #tpu.memory_space<vmem>>, %arg6: memref<128x128xbf16, #tpu.memory_space<vmem>>, %arg7: memref<1x128xf32, #tpu.memory_space<vmem>>, %arg8: memref<128x9xbf16, #tpu.memory_space<vmem>>, %arg9: memref<1x9xf32, #tpu.memory_space<vmem>>, %arg10: memref<8x9xf32, #tpu.memory_space<vmem>>) attributes {dimension_semantics = [#tpu.dimension_semantics<parallel>], iteration_bounds = array<i64: 1>, scalar_prefetch = 0 : i64, scratch_operands = 0 : i64, tpu.core_type = #tpu.core_type<tc>, window_params = [{transform_indices = @transform_0, window_bounds = array<i64: 8, 16>}, {pipeline_mode = #tpu.pipeline_mode<synchronous>, transform_indices = @transform_1, window_bounds = array<i64: 16, 128>}, {pipeline_mode = #tpu.pipeline_mode<synchronous>, transform_indices = @transform_2, window_bounds = array<i64: 1, 128>}, {pipeline_mode = #tpu.pipeline_mode<synchronous>, transform_indices = @transform_3, window_bounds = array<i64: 128, 128>}, {pipeline_mode = #tpu.pipeline_mode<synchronous>, transform_indices = @transform_4, window_bounds = array<i64: 1, 128>}, {pipeline_mode = #tpu.pipeline_mode<synchronous>, transform_indices = @transform_5, window_bounds = array<i64: 128, 128>}, {pipeline_mode = #tpu.pipeline_mode<synchronous>, transform_indices = @transform_6, window_bounds = array<i64: 1, 128>}, {pipeline_mode = #tpu.pipeline_mode<synchronous>, transform_indices = @transform_7, window_bounds = array<i64: 128, 9>}, {pipeline_mode = #tpu.pipeline_mode<synchronous>, transform_indices = @transform_8, window_bounds = array<i64: 1, 9>}, {transform_indices = @transform_9, window_bounds = array<i64: 8, 9>}]} {
    %c0 = arith.constant 0 : index
    %c0_0 = arith.constant 0 : index
    %0 = vector.load %arg1[%c0, %c0_0] : memref<8x16xf32, #tpu.memory_space<vmem>>, vector<8x16xf32>
    %1 = arith.truncf %0 : vector<8x16xf32> to vector<8x16xbf16>
    %c0_1 = arith.constant 0 : index
    %c0_2 = arith.constant 0 : index
    %2 = vector.load %arg2[%c0_1, %c0_2] : memref<16x128xbf16, #tpu.memory_space<vmem>>, vector<16x128xbf16>
    %cst = arith.constant dense<0.000000e+00> : vector<8x128xf32>
    %3 = tpu.matmul %1, %2, %cst {dimension_numbers = #tpu.dot_dimension_numbers<[1], [0], [0], [1], [0, 0, 1, 1], [], []>} : vector<8x16xbf16>, vector<16x128xbf16>, vector<8x128xf32> -> vector<8x128xf32>
    %c0_3 = arith.constant 0 : index
    %c0_4 = arith.constant 0 : index
    %4 = vector.load %arg3[%c0_3, %c0_4] : memref<1x128xf32, #tpu.memory_space<vmem>>, vector<1x128xf32>
    %5 = vector.broadcast %4 : vector<1x128xf32> to vector<8x128xf32>
    %6 = arith.addf %3, %5 : vector<8x128xf32>
    %cst_5 = arith.constant 0.000000e+00 : f32
    %7 = vector.broadcast %cst_5 : f32 to vector<8x128xf32>
    %8 = arith.maximumf %6, %7 : vector<8x128xf32>
    %9 = arith.truncf %8 : vector<8x128xf32> to vector<8x128xbf16>
    %c0_6 = arith.constant 0 : index
    %c0_7 = arith.constant 0 : index
    %10 = vector.load %arg4[%c0_6, %c0_7] : memref<128x128xbf16, #tpu.memory_space<vmem>>, vector<128x128xbf16>
    %cst_8 = arith.constant dense<0.000000e+00> : vector<8x128xf32>
    %11 = tpu.matmul %9, %10, %cst_8 {dimension_numbers = #tpu.dot_dimension_numbers<[1], [0], [0], [1], [0, 0, 1, 1], [], []>} : vector<8x128xbf16>, vector<128x128xbf16>, vector<8x128xf32> -> vector<8x128xf32>
    %c0_9 = arith.constant 0 : index
    %c0_10 = arith.constant 0 : index
    %12 = vector.load %arg5[%c0_9, %c0_10] : memref<1x128xf32, #tpu.memory_space<vmem>>, vector<1x128xf32>
    %13 = vector.broadcast %12 : vector<1x128xf32> to vector<8x128xf32>
    %14 = arith.addf %11, %13 : vector<8x128xf32>
    %cst_11 = arith.constant 0.000000e+00 : f32
    %15 = vector.broadcast %cst_11 : f32 to vector<8x128xf32>
    %16 = arith.maximumf %14, %15 : vector<8x128xf32>
    %17 = arith.truncf %16 : vector<8x128xf32> to vector<8x128xbf16>
    %c0_12 = arith.constant 0 : index
    %c0_13 = arith.constant 0 : index
    %18 = vector.load %arg6[%c0_12, %c0_13] : memref<128x128xbf16, #tpu.memory_space<vmem>>, vector<128x128xbf16>
    %cst_14 = arith.constant dense<0.000000e+00> : vector<8x128xf32>
    %19 = tpu.matmul %17, %18, %cst_14 {dimension_numbers = #tpu.dot_dimension_numbers<[1], [0], [0], [1], [0, 0, 1, 1], [], []>} : vector<8x128xbf16>, vector<128x128xbf16>, vector<8x128xf32> -> vector<8x128xf32>
    %c0_15 = arith.constant 0 : index
    %c0_16 = arith.constant 0 : index
    %20 = vector.load %arg7[%c0_15, %c0_16] : memref<1x128xf32, #tpu.memory_space<vmem>>, vector<1x128xf32>
    %21 = vector.broadcast %20 : vector<1x128xf32> to vector<8x128xf32>
    %22 = arith.addf %19, %21 : vector<8x128xf32>
    %cst_17 = arith.constant 0.000000e+00 : f32
    %23 = vector.broadcast %cst_17 : f32 to vector<8x128xf32>
    %24 = arith.maximumf %22, %23 : vector<8x128xf32>
    %25 = arith.truncf %24 : vector<8x128xf32> to vector<8x128xbf16>
    %c0_18 = arith.constant 0 : index
    %c0_19 = arith.constant 0 : index
    %26 = vector.load %arg8[%c0_18, %c0_19] : memref<128x9xbf16, #tpu.memory_space<vmem>>, vector<128x9xbf16>
    %cst_20 = arith.constant dense<0.000000e+00> : vector<8x9xf32>
    %27 = tpu.matmul %25, %26, %cst_20 {dimension_numbers = #tpu.dot_dimension_numbers<[1], [0], [0], [1], [0, 0, 1, 1], [], []>} : vector<8x128xbf16>, vector<128x9xbf16>, vector<8x9xf32> -> vector<8x9xf32>
    %c0_21 = arith.constant 0 : index
    %c0_22 = arith.constant 0 : index
    %28 = vector.load %arg9[%c0_21, %c0_22] : memref<1x9xf32, #tpu.memory_space<vmem>>, vector<1x9xf32>
    %29 = vector.broadcast %28 : vector<1x9xf32> to vector<8x9xf32>
    %30 = arith.addf %27, %29 : vector<8x9xf32>
    %c0_23 = arith.constant 0 : index
    %c0_24 = arith.constant 0 : index
    %31 = vector.load %arg10[%c0_23, %c0_24] : memref<8x9xf32, #tpu.memory_space<vmem>>, vector<8x9xf32>
    tpu.vector_store %arg10[%c0_23, %c0_24], %30 {strides = array<i32>} : memref<8x9xf32, #tpu.memory_space<vmem>>, vector<8x9xf32>,
    return
  }
  func.func @transform_0(%arg0: i32) -> (i32, i32) {
    %c0_i32 = arith.constant 0 : i32
    %c0_i32_0 = arith.constant 0 : i32
    return %arg0, %c0_i32 : i32, i32
  }
  func.func @transform_1(%arg0: i32) -> (i32, i32) {
    %c0_i32 = arith.constant 0 : i32
    %c0_i32_0 = arith.constant 0 : i32
    %c0_i32_1 = arith.constant 0 : i32
    return %c0_i32, %c0_i32_0 : i32, i32
  }
  func.func @transform_2(%arg0: i32) -> (i32, i32) {
    %c0_i32 = arith.constant 0 : i32
    %c0_i32_0 = arith.constant 0 : i32
    %c0_i32_1 = arith.constant 0 : i32
    return %c0_i32, %c0_i32_0 : i32, i32
  }
  func.func @transform_3(%arg0: i32) -> (i32, i32) {
    %c0_i32 = arith.constant 0 : i32
    %c0_i32_0 = arith.constant 0 : i32
    %c0_i32_1 = arith.constant 0 : i32
    return %c0_i32, %c0_i32_0 : i32, i32
  }
  func.func @transform_4(%arg0: i32) -> (i32, i32) {
    %c0_i32 = arith.constant 0 : i32
    %c0_i32_0 = arith.constant 0 : i32
    %c0_i32_1 = arith.constant 0 : i32
    return %c0_i32, %c0_i32_0 : i32, i32
  }
  func.func @transform_5(%arg0: i32) -> (i32, i32) {
    %c0_i32 = arith.constant 0 : i32
    %c0_i32_0 = arith.constant 0 : i32
    %c0_i32_1 = arith.constant 0 : i32
    return %c0_i32, %c0_i32_0 : i32, i32
  }
  func.func @transform_6(%arg0: i32) -> (i32, i32) {
    %c0_i32 = arith.constant 0 : i32
    %c0_i32_0 = arith.constant 0 : i32
    %c0_i32_1 = arith.constant 0 : i32
    return %c0_i32, %c0_i32_0 : i32, i32
  }
  func.func @transform_7(%arg0: i32) -> (i32, i32) {
    %c0_i32 = arith.constant 0 : i32
    %c0_i32_0 = arith.constant 0 : i32
    %c0_i32_1 = arith.constant 0 : i32
    return %c0_i32, %c0_i32_0 : i32, i32
  }
  func.func @transform_8(%arg0: i32) -> (i32, i32) {
    %c0_i32 = arith.constant 0 : i32
    %c0_i32_0 = arith.constant 0 : i32
    %c0_i32_1 = arith.constant 0 : i32
    return %c0_i32, %c0_i32_0 : i32, i32
  }
  func.func @transform_9(%arg0: i32) -> (i32, i32) {
    %c0_i32 = arith.constant 0 : i32
    %c0_i32_0 = arith.constant 0 : i32
    return %arg0, %c0_i32 : i32, i32
  }
}

</mosaic_0001>

<llo_original>
// kernel: actor_critic_forward.1
$region0: #{actor_critic_forward.1}
  #allocation0 [shape = 'u32[]', space=smem, size = 0x4, offset = 0x4, fixed_abs, tag = 'smem constant byte address 0x4 - core index']
  #allocation1 [shape = 'u32[144,128]{1,0:T(1,128)}', space=vmem, size = 0x12000, scoped, tag = 'internal scratch']
  %s0 = inlined_call_operand.vmem [shape: f32[8,16], index: 0, kind: input, shape index: {}]
  %s1 = inlined_call_operand.hbm [shape: bf16[16,128], index: 1, kind: input, shape index: {}]
  %s2 = inlined_call_operand.vmem [shape: f32[1,128], index: 2, kind: input, shape index: {}]
  %s3 = inlined_call_operand.vmem [shape: bf16[128,128], index: 3, kind: input, shape index: {}]
  %s4 = inlined_call_operand.vmem [shape: f32[1,128], index: 4, kind: input, shape index: {}]
  %s5 = inlined_call_operand.hbm [shape: bf16[128,128], index: 5, kind: input, shape index: {}]
  %s6 = inlined_call_operand.vmem [shape: f32[1,128], index: 6, kind: input, shape index: {}]
  %s7 = inlined_call_operand.vmem [shape: bf16[128,9], index: 7, kind: input, shape index: {}]
  %s8 = inlined_call_operand.vmem [shape: f32[1,9], index: 8, kind: input, shape index: {}]
  %s9 = inlined_call_operand.vmem [shape: f32[8,9], index: 9, kind: output, shape index: {}]
  %s10 = sld [smem:[#allocation0]]
  $region54: #{actor_critic_forward.1} parent=0
    _
  %s12 = ssub.s32 1, %s10
  %s13 = scalar_select 0, %s12, %s10
  $region1: #{actor_critic_forward.1} parent=0
    #allocation2 [shape = 'u8[4096]{0}', space=vmem, size = 0x1000, scoped, tag = 'input window, operand 1, single buffered']
    #allocation3 [shape = 's32[1]{0}', space=sflag, size = 0x4, scoped, tag = 'scoped memory for actor_critic_forward.1']
    #allocation4 [shape = 'u8[32768]{0}', space=vmem, size = 0x8000, scoped, tag = 'input window, operand 5, single buffered']
    #allocation5 [shape = 's32[1]{0}', space=sflag, size = 0x4, scoped, tag = 'scoped memory for actor_critic_forward.1']
    %14 = vsyncpa [#allocation3], 0
    %15 = vsyncpa [#allocation5], 0
    // Predicated region
    $region2: #{actor_critic_forward.1} parent=1 // pred_check
      _
    $region3: #{actor_critic_forward.1} parent=1 // pred_check_branch
      %17 = sbr.rel (0) target = $region5
    $region4: #{actor_critic_forward.1} parent=1 // pred_region
      _
    $region5: #{actor_critic_forward.1} parent=1 // pred_fallthru
      _
    // Predicated region
    $region6: #{actor_critic_forward.1} parent=1 // pred_check
      _
    $region7: #{actor_critic_forward.1} parent=1 // pred_check_branch
      %19 = sbr.rel (0) target = $region9
    $region8: #{actor_critic_forward.1} parent=1 // pred_region
      %s21 = ssub.s32 128, 128
      %22 = vsyncadd [#allocation3], %s21
      %s23 = sshll.u32 [#allocation2], 4
      %s24 = int_to_ptr.vmem [resolvable:$true] %s23
      %29 = dma.hbm_to_vmem [thread:$0]  %s1, 128, %s24, [#allocation3], 64, 64, 4
    $region9: #{actor_critic_forward.1} parent=1 // pred_fallthru
      _
    // Predicated region
    $region10: #{actor_critic_forward.1} parent=1 // pred_check
      _
    $region11: #{actor_critic_forward.1} parent=1 // pred_check_branch
      %31 = sbr.rel (0) target = $region13
    $region12: #{actor_critic_forward.1} parent=1 // pred_region
      _
    $region13: #{actor_critic_forward.1} parent=1 // pred_fallthru
      _
    // Predicated region
    $region14: #{actor_critic_forward.1} parent=1 // pred_check
      _
    $region15: #{actor_critic_forward.1} parent=1 // pred_check_branch
      %33 = sbr.rel (0) target = $region17
    $region16: #{actor_critic_forward.1} parent=1 // pred_region
      _
    $region17: #{actor_critic_forward.1} parent=1 // pred_fallthru
      _
    // Predicated region
    $region18: #{actor_critic_forward.1} parent=1 // pred_check
      _
    $region19: #{actor_critic_forward.1} parent=1 // pred_check_branch
      %35 = sbr.rel (0) target = $region21
    $region20: #{actor_critic_forward.1} parent=1 // pred_region
      _
    $region21: #{actor_critic_forward.1} parent=1 // pred_fallthru
      _
    // Predicated region
    $region22: #{actor_critic_forward.1} parent=1 // pred_check
      _
    $region23: #{actor_critic_forward.1} parent=1 // pred_check_branch
      %37 = sbr.rel (0) target = $region25
    $region24: #{actor_critic_forward.1} parent=1 // pred_region
      %s39 = ssub.s32 1024, 1024
      %40 = vsyncadd [#allocation5], %s39
      %s41 = sshll.u32 [#allocation4], 4
      %s42 = int_to_ptr.vmem [resolvable:$true] %s41
      %47 = dma.hbm_to_vmem [thread:$0]  %s5, 1024, %s42, [#allocation5], 64, 64, 4
    $region25: #{actor_critic_forward.1} parent=1 // pred_fallthru
      _
    // Predicated region
    $region26: #{actor_critic_forward.1} parent=1 // pred_check
      _
    $region27: #{actor_critic_forward.1} parent=1 // pred_check_branch
      %49 = sbr.rel (0) target = $region29
    $region28: #{actor_critic_forward.1} parent=1 // pred_region
      _
    $region29: #{actor_critic_forward.1} parent=1 // pred_fallthru
      _
    // Predicated region
    $region30: #{actor_critic_forward.1} parent=1 // pred_check
      _
    $region31: #{actor_critic_forward.1} parent=1 // pred_check_branch
      %51 = sbr.rel (0) target = $region33
    $region32: #{actor_critic_forward.1} parent=1 // pred_region
      _
    $region33: #{actor_critic_forward.1} parent=1 // pred_fallthru
      _
    // Predicated region
    $region34: #{actor_critic_forward.1} parent=1 // pred_check
      _
    $region35: #{actor_critic_forward.1} parent=1 // pred_check_branch
      %53 = sbr.rel (0) target = $region37
    $region36: #{actor_critic_forward.1} parent=1 // pred_region
      _
    $region37: #{actor_critic_forward.1} parent=1 // pred_fallthru
      _
    // Predicated region
    $region38: #{actor_critic_forward.1} parent=1 // pred_check
      _
    $region39: #{actor_critic_forward.1} parent=1 // pred_check_branch
      %55 = sbr.rel (0) target = $region41
    $region40: #{actor_critic_forward.1} parent=1 // pred_region
      %56 = dma.done [#allocation3], 128
    $region41: #{actor_critic_forward.1} parent=1 // pred_fallthru
      _
    // Predicated region
    $region42: #{actor_critic_forward.1} parent=1 // pred_check
      _
    $region43: #{actor_critic_forward.1} parent=1 // pred_check_branch
      %58 = sbr.rel (0) target = $region45
    $region44: #{actor_critic_forward.1} parent=1 // pred_region
      %59 = dma.done [#allocation5], 1024
    $region45: #{actor_critic_forward.1} parent=1 // pred_fallthru
      _
    %v61 = vld [vmem:[%s0] sm:$0xff]
    %v62 = vpack.c.bf16 %v61, %v61
    %v63 = vld [vmem:[#allocation2] sm:$0xf]
    %v64 = vld [vmem:[#allocation2 + $0x4] sm:$0xf]
    %v65 = vld [vmem:[%s2] sm:$0x1]
    %v67 = vlaneseq
    %v68 = vshrl.u32 %v67, 7
    %v69 = vsub.s32 0, %v68
    %v70 = vrot.slane %v65, %v69
    %v74 = vunpack.c.l.b16 %v63
    %v75 = vunpack.c.l.b16 %v64
    %v76 = vpack.c.b16 %v75, %v74
    %vm78 = vcmask 130048
    %v80 = vsel %vm78, %v62, 0
    %82 = vmatprep.subr.bf16.mxu0 0
    %83 = vmatpush1.bf16.msra.mxu0 0
    %84 = vmatprep.subr.bf16.mxu0 0
    %85 = vmatpush1.bf16.msra.mxu0 0
    %86 = vmatprep.subr.bf16.mxu0 0
    %87 = vmatpush1.bf16.msra.mxu0 0
    %88 = vmatprep.subr.bf16.mxu0 0
    %89 = vmatpush1.bf16.msra.mxu0 0
    %90 = vmatprep.subr.bf16.mxu0 0
    %91 = vmatpush1.bf16.msra.mxu0 0
    %92 = vmatprep.subr.bf16.mxu0 0
    %93 = vmatpush1.bf16.msra.mxu0 0
    %94 = vmatprep.subr.bf16.mxu0 0
    %95 = vmatpush1.bf16.msra.mxu0 0
    %96 = vmatprep.subr.bf16.mxu0 0
    %97 = vmatpush1.bf16.msra.mxu0 %v76
    %98 = vmatprep.subr.bf16.mxu0 0
    %99 = vmatpush2.bf16.msra.mxu0 0
    %100 = vmatprep.subr.bf16.mxu0 0
    %101 = vmatpush2.bf16.msra.mxu0 0
    %102 = vmatprep.subr.bf16.mxu0 0
    %103 = vmatpush2.bf16.msra.mxu0 0
    %104 = vmatprep.subr.bf16.mxu0 0
    %105 = vmatpush2.bf16.msra.mxu0 0
    %106 = vmatprep.subr.bf16.mxu0 0
    %107 = vmatpush2.bf16.msra.mxu0 0
    %108 = vmatprep.subr.bf16.mxu0 0
    %109 = vmatpush2.bf16.msra.mxu0 0
    %110 = vmatprep.subr.bf16.mxu0 0
    %111 = vmatpush2.bf16.msra.mxu0 0
    %112 = vmatprep.subr.bf16.mxu0 0
    %113 = vmatpush2.bf16.msra.mxu0 0
    %114 = vmatprep.mubr.bf16.mxu0 0
    %115 = vmatmul.mubr.bf16.gmra.mxu0 %v80
    %v116 = vpop.f32.mrf.mxu0
    %v117 = vadd.f32 %v70, %v116
    %v118 = vpop.f32.mrf.mxu0
    %v119 = vpop.f32.mrf.mxu0
    %v120 = vpop.f32.mrf.mxu0
    %121 = vdwg.mxu0
    %v122 = vmax.f32 %v117, 0.0
    %v123 = vpack.c.bf16 %v122, %v122
    %v124 = vld [vmem:[%s3] sm:$0xf]
    %v125 = vld [vmem:[%s3 + $0x4] sm:$0xf]
    %v126 = vld [vmem:[%s3 + $0x8] sm:$0xf]
    %v127 = vld [vmem:[%s3 + $0xc] sm:$0xf]
    %v128 = vld [vmem:[%s3 + $0x10] sm:$0xf]
    %v129 = vld [vmem:[%s3 + $0x14] sm:$0xf]
    %v130 = vld [vmem:[%s3 + $0x18] sm:$0xf]
    %v131 = vld [vmem:[%s3 + $0x1c] sm:$0xf]
    %v132 = vld [vmem:[%s3 + $0x20] sm:$0xf]
    %v133 = vld [vmem:[%s3 + $0x24] sm:$0xf]
    %v134 = vld [vmem:[%s3 + $0x28] sm:$0xf]
    %v135 = vld [vmem:[%s3 + $0x2c] sm:$0xf]
    %v136 = vld [vmem:[%s3 + $0x30] sm:$0xf]
    %v137 = vld [vmem:[%s3 + $0x34] sm:$0xf]
    %v138 = vld [vmem:[%s3 + $0x38] sm:$0xf]
    %v139 = vld [vmem:[%s3 + $0x3c] sm:$0xf]
    %v140 = vld [vmem:[%s4] sm:$0x1]
    %v142 = vlaneseq
    %v143 = vshrl.u32 %v142, 7
    %v144 = vsub.s32 0, %v143
    %v145 = vrot.slane %v140, %v144
    %v163 = vunpack.c.l.b16 %v124
    %v164 = vunpack.c.l.b16 %v125
    %v165 = vunpack.c.l.b16 %v126
    %v166 = vunpack.c.l.b16 %v127
    %v167 = vunpack.c.l.b16 %v128
    %v168 = vunpack.c.l.b16 %v129
    %v169 = vunpack.c.l.b16 %v130
    %v170 = vunpack.c.l.b16 %v131
    %v171 = vunpack.c.l.b16 %v132
    %v172 = vunpack.c.l.b16 %v133
    %v173 = vunpack.c.l.b16 %v134
    %v174 = vunpack.c.l.b16 %v135
    %v175 = vunpack.c.l.b16 %v136
    %v176 = vunpack.c.l.b16 %v137
    %v177 = vunpack.c.l.b16 %v138
    %v178 = vunpack.c.l.b16 %v139
    %v179 = vpack.c.b16 %v164, %v163
    %v180 = vpack.c.b16 %v166, %v165
    %v181 = vpack.c.b16 %v168, %v167
    %v182 = vpack.c.b16 %v170, %v169
    %v183 = vpack.c.b16 %v172, %v171
    %v184 = vpack.c.b16 %v174, %v173
    %v185 = vpack.c.b16 %v176, %v175
    %v186 = vpack.c.b16 %v178, %v177
    %195 = vmatprep.subr.bf16.mxu0 0
    %196 = vmatpush1.bf16.msra.mxu0 %v186
    %197 = vmatprep.subr.bf16.mxu0 0
    %198 = vmatpush1.bf16.msra.mxu0 %v185
    %199 = vmatprep.subr.bf16.mxu0 0
    %200 = vmatpush1.bf16.msra.mxu0 %v184
    %201 = vmatprep.subr.bf16.mxu0 0
    %202 = vmatpush1.bf16.msra.mxu0 %v183
    %203 = vmatprep.subr.bf16.mxu0 0
    %204 = vmatpush1.bf16.msra.mxu0 %v182
    %205 = vmatprep.subr.bf16.mxu0 0
    %206 = vmatpush1.bf16.msra.mxu0 %v181
    %207 = vmatprep.subr.bf16.mxu0 0
    %208 = vmatpush1.bf16.msra.mxu0 %v180
    %209 = vmatprep.subr.bf16.mxu0 0
    %210 = vmatpush1.bf16.msra.mxu0 %v179
    %211 = vmatprep.subr.bf16.mxu0 0
    %212 = vmatpush2.bf16.msra.mxu0 0
    %213 = vmatprep.subr.bf16.mxu0 0
    %214 = vmatpush2.bf16.msra.mxu0 0
    %215 = vmatprep.subr.bf16.mxu0 0
    %216 = vmatpush2.bf16.msra.mxu0 0
    %217 = vmatprep.subr.bf16.mxu0 0
    %218 = vmatpush2.bf16.msra.mxu0 0
    %219 = vmatprep.subr.bf16.mxu0 0
    %220 = vmatpush2.bf16.msra.mxu0 0
    %221 = vmatprep.subr.bf16.mxu0 0
    %222 = vmatpush2.bf16.msra.mxu0 0
    %223 = vmatprep.subr.bf16.mxu0 0
    %224 = vmatpush2.bf16.msra.mxu0 0
    %225 = vmatprep.subr.bf16.mxu0 0
    %226 = vmatpush2.bf16.msra.mxu0 0
    %227 = vmatprep.mubr.bf16.mxu0 0
    %228 = vmatmul.mubr.bf16.gmra.mxu0 %v123
    %v229 = vpop.f32.mrf.mxu0
    %v230 = vadd.f32 %v145, %v229
    %v231 = vpop.f32.mrf.mxu0
    %v232 = vpop.f32.mrf.mxu0
    %v233 = vpop.f32.mrf.mxu0
    %234 = vdwg.mxu0
    %v235 = vmax.f32 %v230, 0.0
    %v236 = vpack.c.bf16 %v235, %v235
    %v237 = vld [vmem:[#allocation4] sm:$0xf]
    %v238 = vld [vmem:[#allocation4 + $0x4] sm:$0xf]
    %v239 = vld [vmem:[#allocation4 + $0x8] sm:$0xf]
    %v240 = vld [vmem:[#allocation4 + $0xc] sm:$0xf]
    %v241 = vld [vmem:[#allocation4 + $0x10] sm:$0xf]
    %v242 = vld [vmem:[#allocation4 + $0x14] sm:$0xf]
    %v243 = vld [vmem:[#allocation4 + $0x18] sm:$0xf]
    %v244 = vld [vmem:[#allocation4 + $0x1c] sm:$0xf]
    %v245 = vld [vmem:[#allocation4 + $0x20] sm:$0xf]
    %v246 = vld [vmem:[#allocation4 + $0x24] sm:$0xf]
    %v247 = vld [vmem:[#allocation4 + $0x28] sm:$0xf]
    %v248 = vld [vmem:[#allocation4 + $0x2c] sm:$0xf]
    %v249 = vld [vmem:[#allocation4 + $0x30] sm:$0xf]
    %v250 = vld [vmem:[#allocation4 + $0x34] sm:$0xf]
    %v251 = vld [vmem:[#allocation4 + $0x38] sm:$0xf]
    %v252 = vld [vmem:[#allocation4 + $0x3c] sm:$0xf]
    %v253 = vld [vmem:[%s6] sm:$0x1]
    %v255 = vlaneseq
    %v256 = vshrl.u32 %v255, 7
    %v257 = vsub.s32 0, %v256
    %v258 = vrot.slane %v253, %v257
    %v276 = vunpack.c.l.b16 %v237
    %v277 = vunpack.c.l.b16 %v238
    %v278 = vunpack.c.l.b16 %v239
    %v279 = vunpack.c.l.b16 %v240
    %v280 = vunpack.c.l.b16 %v241
    %v281 = vunpack.c.l.b16 %v242
    %v282 = vunpack.c.l.b16 %v243
    %v283 = vunpack.c.l.b16 %v244
    %v284 = vunpack.c.l.b16 %v245
    %v285 = vunpack.c.l.b16 %v246
    %v286 = vunpack.c.l.b16 %v247
    %v287 = vunpack.c.l.b16 %v248
    %v288 = vunpack.c.l.b16 %v249
    %v289 = vunpack.c.l.b16 %v250
    %v290 = vunpack.c.l.b16 %v251
    %v291 = vunpack.c.l.b16 %v252
    %v292 = vpack.c.b16 %v277, %v276
    %v293 = vpack.c.b16 %v279, %v278
    %v294 = vpack.c.b16 %v281, %v280
    %v295 = vpack.c.b16 %v283, %v282
    %v296 = vpack.c.b16 %v285, %v284
    %v297 = vpack.c.b16 %v287, %v286
    %v298 = vpack.c.b16 %v289, %v288
    %v299 = vpack.c.b16 %v291, %v290
    %308 = vmatprep.subr.bf16.mxu0 0
    %309 = vmatpush1.bf16.msra.mxu0 %v299
    %310 = vmatprep.subr.bf16.mxu0 0
    %311 = vmatpush1.bf16.msra.mxu0 %v298
    %312 = vmatprep.subr.bf16.mxu0 0
    %313 = vmatpush1.bf16.msra.mxu0 %v297
    %314 = vmatprep.subr.bf16.mxu0 0
    %315 = vmatpush1.bf16.msra.mxu0 %v296
    %316 = vmatprep.subr.bf16.mxu0 0
    %317 = vmatpush1.bf16.msra.mxu0 %v295
    %318 = vmatprep.subr.bf16.mxu0 0
    %319 = vmatpush1.bf16.msra.mxu0 %v294
    %320 = vmatprep.subr.bf16.mxu0 0
    %321 = vmatpush1.bf16.msra.mxu0 %v293
    %322 = vmatprep.subr.bf16.mxu0 0
    %323 = vmatpush1.bf16.msra.mxu0 %v292
    %324 = vmatprep.subr.bf16.mxu0 0
    %325 = vmatpush2.bf16.msra.mxu0 0
    %326 = vmatprep.subr.bf16.mxu0 0
    %327 = vmatpush2.bf16.msra.mxu0 0
    %328 = vmatprep.subr.bf16.mxu0 0
    %329 = vmatpush2.bf16.msra.mxu0 0
    %330 = vmatprep.subr.bf16.mxu0 0
    %331 = vmatpush2.bf16.msra.mxu0 0
    %332 = vmatprep.subr.bf16.mxu0 0
    %333 = vmatpush2.bf16.msra.mxu0 0
    %334 = vmatprep.subr.bf16.mxu0 0
    %335 = vmatpush2.bf16.msra.mxu0 0
    %336 = vmatprep.subr.bf16.mxu0 0
    %337 = vmatpush2.bf16.msra.mxu0 0
    %338 = vmatprep.subr.bf16.mxu0 0
    %339 = vmatpush2.bf16.msra.mxu0 0
    %340 = vmatprep.mubr.bf16.mxu0 0
    %341 = vmatmul.mubr.bf16.gmra.mxu0 %v236
    %v342 = vpop.f32.mrf.mxu0
    %v343 = vadd.f32 %v258, %v342
    %v344 = vpop.f32.mrf.mxu0
    %v345 = vpop.f32.mrf.mxu0
    %v346 = vpop.f32.mrf.mxu0
    %347 = vdwg.mxu0
    %v348 = vmax.f32 %v343, 0.0
    %v349 = vpack.c.bf16 %v348, %v348
    %v350 = vld [vmem:[%s7] sm:$0xf]
    %v351 = vld [vmem:[%s7 + $0x4] sm:$0xf]
    %v352 = vld [vmem:[%s7 + $0x8] sm:$0xf]
    %v353 = vld [vmem:[%s7 + $0xc] sm:$0xf]
    %v354 = vld [vmem:[%s7 + $0x10] sm:$0xf]
    %v355 = vld [vmem:[%s7 + $0x14] sm:$0xf]
    %v356 = vld [vmem:[%s7 + $0x18] sm:$0xf]
    %v357 = vld [vmem:[%s7 + $0x1c] sm:$0xf]
    %v358 = vld [vmem:[%s7 + $0x20] sm:$0xf]
    %v359 = vld [vmem:[%s7 + $0x24] sm:$0xf]
    %v360 = vld [vmem:[%s7 + $0x28] sm:$0xf]
    %v361 = vld [vmem:[%s7 + $0x2c] sm:$0xf]
    %v362 = vld [vmem:[%s7 + $0x30] sm:$0xf]
    %v363 = vld [vmem:[%s7 + $0x34] sm:$0xf]
    %v364 = vld [vmem:[%s7 + $0x38] sm:$0xf]
    %v365 = vld [vmem:[%s7 + $0x3c] sm:$0xf]
    %v366 = vld [vmem:[%s8] sm:$0x1]
    %v368 = vlaneseq
    %v369 = vshrl.u32 %v368, 7
    %v370 = vsub.s32 0, %v369
    %v371 = vrot.slane %v366, %v370
    %v389 = vunpack.c.l.b16 %v350
    %v390 = vunpack.c.l.b16 %v351
    %v391 = vunpack.c.l.b16 %v352
    %v392 = vunpack.c.l.b16 %v353
    %v393 = vunpack.c.l.b16 %v354
    %v394 = vunpack.c.l.b16 %v355
    %v395 = vunpack.c.l.b16 %v356
    %v396 = vunpack.c.l.b16 %v357
    %v397 = vunpack.c.l.b16 %v358
    %v398 = vunpack.c.l.b16 %v359
    %v399 = vunpack.c.l.b16 %v360
    %v400 = vunpack.c.l.b16 %v361
    %v401 = vunpack.c.l.b16 %v362
    %v402 = vunpack.c.l.b16 %v363
    %v403 = vunpack.c.l.b16 %v364
    %v404 = vunpack.c.l.b16 %v365
    %v405 = vpack.c.b16 %v390, %v389
    %v406 = vpack.c.b16 %v392, %v391
    %v407 = vpack.c.b16 %v394, %v393
    %v408 = vpack.c.b16 %v396, %v395
    %v409 = vpack.c.b16 %v398, %v397
    %v410 = vpack.c.b16 %v400, %v399
    %v411 = vpack.c.b16 %v402, %v401
    %v412 = vpack.c.b16 %v404, %v403
    %421 = vmatprep.subr.bf16.mxu0 0
    %422 = vmatpush1.bf16.msra.mxu0 %v412
    %423 = vmatprep.subr.bf16.mxu0 0
    %424 = vmatpush1.bf16.msra.mxu0 %v411
    %425 = vmatprep.subr.bf16.mxu0 0
    %426 = vmatpush1.bf16.msra.mxu0 %v410
    %427 = vmatprep.subr.bf16.mxu0 0
    %428 = vmatpush1.bf16.msra.mxu0 %v409
    %429 = vmatprep.subr.bf16.mxu0 0
    %430 = vmatpush1.bf16.msra.mxu0 %v408
    %431 = vmatprep.subr.bf16.mxu0 0
    %432 = vmatpush1.bf16.msra.mxu0 %v407
    %433 = vmatprep.subr.bf16.mxu0 0
    %434 = vmatpush1.bf16.msra.mxu0 %v406
    %435 = vmatprep.subr.bf16.mxu0 0
    %436 = vmatpush1.bf16.msra.mxu0 %v405
    %437 = vmatprep.subr.bf16.mxu0 0
    %438 = vmatpush2.bf16.msra.mxu0 0
    %439 = vmatprep.subr.bf16.mxu0 0
    %440 = vmatpush2.bf16.msra.mxu0 0
    %441 = vmatprep.subr.bf16.mxu0 0
    %442 = vmatpush2.bf16.msra.mxu0 0
    %443 = vmatprep.subr.bf16.mxu0 0
    %444 = vmatpush2.bf16.msra.mxu0 0
    %445 = vmatprep.subr.bf16.mxu0 0
    %446 = vmatpush2.bf16.msra.mxu0 0
    %447 = vmatprep.subr.bf16.mxu0 0
    %448 = vmatpush2.bf16.msra.mxu0 0
    %449 = vmatprep.subr.bf16.mxu0 0
    %450 = vmatpush2.bf16.msra.mxu0 0
    %451 = vmatprep.subr.bf16.mxu0 0
    %452 = vmatpush2.bf16.msra.mxu0 0
    %453 = vmatprep.mubr.bf16.mxu0 0
    %454 = vmatmul.mubr.bf16.gmra.mxu0 %v349
    %v455 = vpop.f32.mrf.mxu0
    %v456 = vadd.f32 %v371, %v455
    %v457 = vpop.f32.mrf.mxu0
    %v458 = vpop.f32.mrf.mxu0
    %v459 = vpop.f32.mrf.mxu0
    %460 = vdwg.mxu0
    %vm461 = vcmask 72704
    %462 = vst.msk [vmem:[%s9] sm:$0xff] %vm461, %v456
    // Predicated region
    $region46: #{actor_critic_forward.1} parent=1 // pred_check
      _
    $region47: #{actor_critic_forward.1} parent=1 // pred_check_branch
      %464 = sbr.rel (0) target = $region49
    $region48: #{actor_critic_forward.1} parent=1 // pred_region
      _
    $region49: #{actor_critic_forward.1} parent=1 // pred_fallthru
      _
    // Predicated region
    $region50: #{actor_critic_forward.1} parent=1 // pred_check
      _
    $region51: #{actor_critic_forward.1} parent=1 // pred_check_branch
      %466 = sbr.rel (0) target = $region53
    $region52: #{actor_critic_forward.1} parent=1 // pred_region
      _
    $region53: #{actor_critic_forward.1} parent=1 // pred_fallthru
      _
    %467 = vsyncpa [#allocation3], 1
    %468 = vsyncpa [#allocation5], 1

</llo_original>
